<compile_context>
chip_gen: v7x
topology: tpu7x:2x2x1
jax: 0.10.0
libtpu: 0.0.40
codegen_flags: <defaults>
</compile_context>

<pallas_src>
import functools

import jax
import jax.numpy as jnp
from jax.experimental import pallas as pl
from jax.experimental.pallas import tpu as pltpu


def _round_up(n, m):
    return ((n + m - 1) // m) * m


def mlp_kernel(x_ref, w1_ref, b1_ref, w2_ref, b2_ref, o_ref):
    # x_ref: (tm, D)   w1_ref: (D, Hp)   b1_ref: (1, Hp)
    # w2_ref: (Hp, D)  b2_ref: (1, D)    o_ref: (tm, D)
    x = x_ref[...].astype(w1_ref.dtype)           # no-op in f32; bf16 on v5e path
    h = jnp.dot(x, w1_ref[...], preferred_element_type=jnp.float32)
    h = jax.nn.sigmoid(h + b1_ref[...].astype(jnp.float32))      # f32 EUP/VPU math
    out = jnp.dot(h.astype(w2_ref.dtype), w2_ref[...],
                  preferred_element_type=jnp.float32)
    o_ref[...] = (out + b2_ref[...].astype(jnp.float32)).astype(o_ref.dtype)


def neural_network_forward(x, w1, b1, w2, b2, *, batch_tile=1024, mxu_dtype=None):
    """Forward pass of the two-layer MLP.

    x: (B, D).  w1: (D, H), b1: (H,), w2: (H, D), b2: (D,)  (weights stored
    as (in, out), i.e. pre-transposed vs. PyTorch's (out, in)).  Returns (B, D).
    """
    B, D = x.shape
    H = w1.shape[1]
    Hp = _round_up(H, 16)           # sublane-friendly; exact (zero rows of W2)

    wdt = mxu_dtype if mxu_dtype is not None else w1.dtype
    w1p = jnp.pad(w1, ((0, 0), (0, Hp - H))).astype(wdt)          # (D, Hp)
    b1p = jnp.pad(b1, (0, Hp - H)).reshape(1, Hp).astype(jnp.float32)
    w2p = jnp.pad(w2, ((0, Hp - H), (0, 0))).astype(wdt)          # (Hp, D)
    b2p = b2.reshape(1, D).astype(jnp.float32)

    # Batch (row) tile: multiple of 8 sublanes; force >= 2 grid steps when the
    # batch allows so v7x's two TensorCores both get work.
    if B <= 8:
        tm = _round_up(max(B, 1), 8)
    else:
        tm = min(_round_up(batch_tile, 8), _round_up((B + 1) // 2, 8))
    Bp = _round_up(B, tm)
    xp = x if Bp == B else jnp.pad(x, ((0, Bp - B), (0, 0)))      # cheap row pad

    out = pl.pallas_call(
        mlp_kernel,
        out_shape=jax.ShapeDtypeStruct((Bp, D), x.dtype),
        grid_spec=pltpu.PrefetchScalarGridSpec(
            num_scalar_prefetch=0,
            grid=(Bp // tm,),
            in_specs=[
                pl.BlockSpec((tm, D), lambda i: (i, 0)),   # x row tile (contiguous DMA)
                pl.BlockSpec((D, Hp), lambda i: (0, 0)),   # W1, VMEM-resident
                pl.BlockSpec((1, Hp), lambda i: (0, 0)),   # b1
                pl.BlockSpec((Hp, D), lambda i: (0, 0)),   # W2, VMEM-resident
                pl.BlockSpec((1, D), lambda i: (0, 0)),    # b2
            ],
            out_specs=pl.BlockSpec((tm, D), lambda i: (i, 0)),
        ),
        compiler_params=pltpu.CompilerParams(
            dimension_semantics=("parallel",),
        ),
    )(xp, w1p, b1p, w2p, b2p)

    return out if Bp == B else out[:B]


def init_params(key, input_shape, hidden=10):
    """Matches the PyTorch module: weights ~ N(0, 1) (torch.nn.init.normal_),
    biases use the PyTorch default Linear init U(-1/sqrt(fan_in), +1/sqrt(fan_in))."""
    k1, k2, k3, k4 = jax.random.split(key, 4)
    # PyTorch stores weight as (out, in); we keep (in, out) for x @ W.
    w1 = jax.random.normal(k1, (input_shape, hidden), jnp.float32)
    w2 = jax.random.normal(k2, (hidden, input_shape), jnp.float32)
    bound1 = 1.0 / jnp.sqrt(jnp.float32(input_shape))
    bound2 = 1.0 / jnp.sqrt(jnp.float32(hidden))
    b1 = jax.random.uniform(k3, (hidden,), jnp.float32, -bound1, bound1)
    b2 = jax.random.uniform(k4, (input_shape,), jnp.float32, -bound2, bound2)
    return w1, b1, w2, b2


if __name__ == "__main__":
    key = jax.random.PRNGKey(0)
    kx, kp, kx2 = jax.random.split(key, 3)

    batch = 8
    input_shape = 32   # feature dim of the Linear layers

    x = jax.random.normal(kx, (batch, input_shape), jnp.float32)
    w1, b1, w2, b2 = init_params(kp, input_shape)

    fwd = jax.jit(functools.partial(neural_network_forward, batch_tile=1024))

    # Small demo shape (single grid step).
    out = jax.block_until_ready(fwd(x, w1, b1, w2, b2))
    ref = jax.nn.sigmoid(x @ w1 + b1) @ w2 + b2
    assert out.shape == (batch, input_shape)
    assert jnp.allclose(out, ref, atol=1e-3, rtol=1e-3)

    # Multi-step grid (>= 2 steps -> both TensorCores on v7x) + padded tail.
    x2 = jax.random.normal(kx2, (300, input_shape), jnp.float32)
    out2 = jax.block_until_ready(fwd(x2, w1, b1, w2, b2))
    ref2 = jax.nn.sigmoid(x2 @ w1 + b1) @ w2 + b2
    assert out2.shape == (300, input_shape)
    assert jnp.allclose(out2, ref2, atol=1e-3, rtol=1e-3)

    print("KERNEL_OK")
</pallas_src>

<mosaic_0001>
module attributes {stable_mosaic.version = 11 : i64} {
  func.func @mlp_kernel(%arg0: i32, %arg1: memref<8x32xf32, #tpu.memory_space<vmem>>, %arg2: memref<32x16xf32, #tpu.memory_space<vmem>>, %arg3: memref<1x16xf32, #tpu.memory_space<vmem>>, %arg4: memref<16x32xf32, #tpu.memory_space<vmem>>, %arg5: memref<1x32xf32, #tpu.memory_space<vmem>>, %arg6: memref<8x32xf32, #tpu.memory_space<vmem>>) attributes {dimension_semantics = [#tpu.dimension_semantics<parallel>], iteration_bounds = array<i64: 1>, scalar_prefetch = 0 : i64, scratch_operands = 0 : i64, tpu.core_type = #tpu.core_type<tc>, window_params = [{transform_indices = @transform_0, window_bounds = array<i64: 8, 32>}, {pipeline_mode = #tpu.pipeline_mode<synchronous>, transform_indices = @transform_1, window_bounds = array<i64: 32, 16>}, {pipeline_mode = #tpu.pipeline_mode<synchronous>, transform_indices = @transform_2, window_bounds = array<i64: 1, 16>}, {pipeline_mode = #tpu.pipeline_mode<synchronous>, transform_indices = @transform_3, window_bounds = array<i64: 16, 32>}, {pipeline_mode = #tpu.pipeline_mode<synchronous>, transform_indices = @transform_4, window_bounds = array<i64: 1, 32>}, {transform_indices = @transform_5, window_bounds = array<i64: 8, 32>}]} {
    %c0 = arith.constant 0 : index
    %c0_0 = arith.constant 0 : index
    %0 = vector.load %arg1[%c0, %c0_0] : memref<8x32xf32, #tpu.memory_space<vmem>>, vector<8x32xf32>
    %c0_1 = arith.constant 0 : index
    %c0_2 = arith.constant 0 : index
    %1 = vector.load %arg2[%c0_1, %c0_2] : memref<32x16xf32, #tpu.memory_space<vmem>>, vector<32x16xf32>
    %cst = arith.constant dense<0.000000e+00> : vector<8x16xf32>
    %2 = tpu.matmul %0, %1, %cst {dimension_numbers = #tpu.dot_dimension_numbers<[1], [0], [0], [1], [0, 0, 1, 1], [], []>} : vector<8x32xf32>, vector<32x16xf32>, vector<8x16xf32> -> vector<8x16xf32>
    %c0_3 = arith.constant 0 : index
    %c0_4 = arith.constant 0 : index
    %3 = vector.load %arg3[%c0_3, %c0_4] : memref<1x16xf32, #tpu.memory_space<vmem>>, vector<1x16xf32>
    %4 = vector.broadcast %3 : vector<1x16xf32> to vector<8x16xf32>
    %5 = arith.addf %2, %4 : vector<8x16xf32>
    %6 = arith.negf %5 : vector<8x16xf32>
    %7 = math.exp %6 : vector<8x16xf32>
    %cst_5 = arith.constant 1.000000e+00 : f32
    %8 = vector.broadcast %cst_5 : f32 to vector<8x16xf32>
    %9 = arith.addf %8, %7 : vector<8x16xf32>
    %10 = arith.divf %8, %9 : vector<8x16xf32>
    %c0_6 = arith.constant 0 : index
    %c0_7 = arith.constant 0 : index
    %11 = vector.load %arg4[%c0_6, %c0_7] : memref<16x32xf32, #tpu.memory_space<vmem>>, vector<16x32xf32>
    %cst_8 = arith.constant dense<0.000000e+00> : vector<8x32xf32>
    %12 = tpu.matmul %10, %11, %cst_8 {dimension_numbers = #tpu.dot_dimension_numbers<[1], [0], [0], [1], [0, 0, 1, 1], [], []>} : vector<8x16xf32>, vector<16x32xf32>, vector<8x32xf32> -> vector<8x32xf32>
    %c0_9 = arith.constant 0 : index
    %c0_10 = arith.constant 0 : index
    %13 = vector.load %arg5[%c0_9, %c0_10] : memref<1x32xf32, #tpu.memory_space<vmem>>, vector<1x32xf32>
    %14 = vector.broadcast %13 : vector<1x32xf32> to vector<8x32xf32>
    %15 = arith.addf %12, %14 : vector<8x32xf32>
    %c0_11 = arith.constant 0 : index
    %c0_12 = arith.constant 0 : index
    %16 = vector.load %arg6[%c0_11, %c0_12] : memref<8x32xf32, #tpu.memory_space<vmem>>, vector<8x32xf32>
    tpu.vector_store %arg6[%c0_11, %c0_12], %15 {strides = array<i32>} : memref<8x32xf32, #tpu.memory_space<vmem>>, vector<8x32xf32>,
    return
  }
  func.func @transform_0(%arg0: i32) -> (i32, i32) {
    %c0_i32 = arith.constant 0 : i32
    %c0_i32_0 = arith.constant 0 : i32
    return %arg0, %c0_i32 : i32, i32
  }
  func.func @transform_1(%arg0: i32) -> (i32, i32) {
    %c0_i32 = arith.constant 0 : i32
    %c0_i32_0 = arith.constant 0 : i32
    %c0_i32_1 = arith.constant 0 : i32
    return %c0_i32, %c0_i32_0 : i32, i32
  }
  func.func @transform_2(%arg0: i32) -> (i32, i32) {
    %c0_i32 = arith.constant 0 : i32
    %c0_i32_0 = arith.constant 0 : i32
    %c0_i32_1 = arith.constant 0 : i32
    return %c0_i32, %c0_i32_0 : i32, i32
  }
  func.func @transform_3(%arg0: i32) -> (i32, i32) {
    %c0_i32 = arith.constant 0 : i32
    %c0_i32_0 = arith.constant 0 : i32
    %c0_i32_1 = arith.constant 0 : i32
    return %c0_i32, %c0_i32_0 : i32, i32
  }
  func.func @transform_4(%arg0: i32) -> (i32, i32) {
    %c0_i32 = arith.constant 0 : i32
    %c0_i32_0 = arith.constant 0 : i32
    %c0_i32_1 = arith.constant 0 : i32
    return %c0_i32, %c0_i32_0 : i32, i32
  }
  func.func @transform_5(%arg0: i32) -> (i32, i32) {
    %c0_i32 = arith.constant 0 : i32
    %c0_i32_0 = arith.constant 0 : i32
    return %arg0, %c0_i32 : i32, i32
  }
}

</mosaic_0001>

<llo_original>
// kernel: neural_network_forward.1
$region0: #{neural_network_forward.1}
  #allocation0 [shape = 'u32[]', space=smem, size = 0x4, offset = 0x4, fixed_abs, tag = 'smem constant byte address 0x4 - core index']
  #allocation1 [shape = 'u32[144,128]{1,0:T(1,128)}', space=vmem, size = 0x12000, scoped, tag = 'internal scratch']
  %s0 = inlined_call_operand.vmem [shape: f32[8,32], index: 0, kind: input, shape index: {}]
  %s1 = inlined_call_operand.vmem [shape: f32[32,16], index: 1, kind: input, shape index: {}]
  %s2 = inlined_call_operand.vmem [shape: f32[1,16], index: 2, kind: input, shape index: {}]
  %s3 = inlined_call_operand.vmem [shape: f32[16,32], index: 3, kind: input, shape index: {}]
  %s4 = inlined_call_operand.vmem [shape: f32[1,32], index: 4, kind: input, shape index: {}]
  %s5 = inlined_call_operand.hbm [shape: f32[8,32], index: 5, kind: output, shape index: {}]
  %s6 = sld [smem:[#allocation0]]
  $region30: #{neural_network_forward.1} parent=0
    _
  %s8 = ssub.s32 1, %s6
  %s9 = scalar_select 0, %s8, %s6
  $region1: #{neural_network_forward.1} parent=0
    #allocation2 [shape = 'u8[4096]{0}', space=vmem, size = 0x1000, scoped, tag = 'output window, operand 0, single buffered']
    #allocation3 [shape = 's32[1]{0}', space=sflag, size = 0x4, scoped, tag = 'scoped memory for neural_network_forward.1']
    %10 = vsyncpa [#allocation3], 0
    // Predicated region
    $region2: #{neural_network_forward.1} parent=1 // pred_check
      _
    $region3: #{neural_network_forward.1} parent=1 // pred_check_branch
      %12 = sbr.rel (0) target = $region5
    $region4: #{neural_network_forward.1} parent=1 // pred_region
      _
    $region5: #{neural_network_forward.1} parent=1 // pred_fallthru
      _
    // Predicated region
    $region6: #{neural_network_forward.1} parent=1 // pred_check
      _
    $region7: #{neural_network_forward.1} parent=1 // pred_check_branch
      %14 = sbr.rel (0) target = $region9
    $region8: #{neural_network_forward.1} parent=1 // pred_region
      _
    $region9: #{neural_network_forward.1} parent=1 // pred_fallthru
      _
    // Predicated region
    $region10: #{neural_network_forward.1} parent=1 // pred_check
      _
    $region11: #{neural_network_forward.1} parent=1 // pred_check_branch
      %16 = sbr.rel (0) target = $region13
    $region12: #{neural_network_forward.1} parent=1 // pred_region
      _
    $region13: #{neural_network_forward.1} parent=1 // pred_fallthru
      _
    // Predicated region
    $region14: #{neural_network_forward.1} parent=1 // pred_check
      _
    $region15: #{neural_network_forward.1} parent=1 // pred_check_branch
      %18 = sbr.rel (0) target = $region17
    $region16: #{neural_network_forward.1} parent=1 // pred_region
      _
    $region17: #{neural_network_forward.1} parent=1 // pred_fallthru
      _
    // Predicated region
    $region18: #{neural_network_forward.1} parent=1 // pred_check
      _
    $region19: #{neural_network_forward.1} parent=1 // pred_check_branch
      %20 = sbr.rel (0) target = $region21
    $region20: #{neural_network_forward.1} parent=1 // pred_region
      _
    $region21: #{neural_network_forward.1} parent=1 // pred_fallthru
      _
    %v21 = vld [vmem:[%s0] sm:$0xff]
    %v22 = vld [vmem:[%s1] sm:$0xff]
    %v23 = vld [vmem:[%s1 + $0x8] sm:$0xff]
    %v24 = vld [vmem:[%s1 + $0x10] sm:$0xff]
    %v25 = vld [vmem:[%s1 + $0x18] sm:$0xff]
    %v26 = vld [vmem:[%s2] sm:$0x1]
    %v28 = vlaneseq
    %v29 = vshrl.u32 %v28, 7
    %v30 = vsub.s32 0, %v29
    %v31 = vrot.slane %v26, %v30
    %vm33 = vcmask 261120
    %v35 = vsel %vm33, %v21, 0
    %37 = vmatprep.subr.mxu0 0.0
    %38 = vmatpush1.msra.mxu0 %v22
    %39 = vmatprep.subr.mxu0 0.0
    %40 = vmatpush1.msra.mxu0 %v23
    %41 = vmatprep.subr.mxu0 0.0
    %42 = vmatpush1.msra.mxu0 %v24
    %43 = vmatprep.subr.mxu0 0.0
    %44 = vmatpush1.msra.mxu0 %v25
    %45 = vmatprep.subr.mxu0 0.0
    %46 = vmatpush1.msra.mxu0 0.0
    %47 = vmatprep.subr.mxu0 0.0
    %48 = vmatpush1.msra.mxu0 0.0
    %49 = vmatprep.subr.mxu0 0.0
    %50 = vmatpush1.msra.mxu0 0.0
    %51 = vmatprep.subr.mxu0 0.0
    %52 = vmatpush1.msra.mxu0 0.0
    %53 = vmatprep.subr.mxu0 0.0
    %54 = vmatpush1.msra.mxu0 0.0
    %55 = vmatprep.subr.mxu0 0.0
    %56 = vmatpush1.msra.mxu0 0.0
    %57 = vmatprep.subr.mxu0 0.0
    %58 = vmatpush1.msra.mxu0 0.0
    %59 = vmatprep.subr.mxu0 0.0
    %60 = vmatpush1.msra.mxu0 0.0
    %61 = vmatprep.subr.mxu0 0.0
    %62 = vmatpush1.msra.mxu0 0.0
    %63 = vmatprep.subr.mxu0 0.0
    %64 = vmatpush1.msra.mxu0 0.0
    %65 = vmatprep.subr.mxu0 0.0
    %66 = vmatpush1.msra.mxu0 0.0
    %67 = vmatprep.subr.mxu0 0.0
    %68 = vmatpush1.msra.mxu0 0.0
    %69 = vmatprep.subr.mxu0 0.0
    %70 = vmatpush1.msra.mxu0 0.0
    %71 = vmatprep.subr.mxu0 0.0
    %72 = vmatpush1.msra.mxu0 0.0
    %73 = vmatprep.subr.mxu0 0.0
    %74 = vmatpush1.msra.mxu0 0.0
    %75 = vmatprep.subr.mxu0 0.0
    %76 = vmatpush1.msra.mxu0 0.0
    %77 = vmatprep.subr.mxu0 0.0
    %78 = vmatpush1.msra.mxu0 0.0
    %79 = vmatprep.subr.mxu0 0.0
    %80 = vmatpush1.msra.mxu0 0.0
    %81 = vmatprep.subr.mxu0 0.0
    %82 = vmatpush1.msra.mxu0 0.0
    %83 = vmatprep.subr.mxu0 0.0
    %84 = vmatpush1.msra.mxu0 0.0
    %85 = vmatprep.subr.mxu0 0.0
    %86 = vmatpush1.msra.mxu0 0.0
    %87 = vmatprep.subr.mxu0 0.0
    %88 = vmatpush1.msra.mxu0 0.0
    %89 = vmatprep.subr.mxu0 0.0
    %90 = vmatpush1.msra.mxu0 0.0
    %91 = vmatprep.subr.mxu0 0.0
    %92 = vmatpush1.msra.mxu0 0.0
    %93 = vmatprep.subr.mxu0 0.0
    %94 = vmatpush1.msra.mxu0 0.0
    %95 = vmatprep.subr.mxu0 0.0
    %96 = vmatpush1.msra.mxu0 0.0
    %97 = vmatprep.subr.mxu0 0.0
    %98 = vmatpush1.msra.mxu0 0.0
    %99 = vmatprep.subr.mxu0 0.0
    %100 = vmatpush1.msra.mxu0 0.0
    %101 = vmatprep.mubr.f32.mxu0 0.0
    %102 = vmatmul.mubr.f32.gmra.mrb[0].mxu0 %v35
    %v103 = vpop.f32.mrb[0].mxu0
    %v104 = vadd.f32 %v31, %v103
    %v105 = vpop.f32.mrb[0].mxu0
    %106 = vdwg.mxu0
    %v107 = vxor.u32 %v104, 2147483648
    %v108 = vmul.f32 %v107, 1.442695
    %v109 = vpow.pop %v108
    %v110 = vadd.f32 %v109, 1.0
    %v111 = vrcp.pop %v110
    %v112 = vmul.f32 1.0, %v111
    %v113 = vld [vmem:[%s3] sm:$0xff]
    %v114 = vld [vmem:[%s3 + $0x8] sm:$0xff]
    %v115 = vld [vmem:[%s4] sm:$0x1]
    %v117 = vlaneseq
    %v118 = vshrl.u32 %v117, 7
    %v119 = vsub.s32 0, %v118
    %v120 = vrot.slane %v115, %v119
    %vm122 = vcmask 130048
    %v124 = vsel %vm122, %v112, 0
    %126 = vmatprep.subr.mxu0 0.0
    %127 = vmatpush1.msra.mxu0 %v113
    %128 = vmatprep.subr.mxu0 0.0
    %129 = vmatpush1.msra.mxu0 %v114
    %130 = vmatprep.subr.mxu0 0.0
    %131 = vmatpush1.msra.mxu0 0.0
    %132 = vmatprep.subr.mxu0 0.0
    %133 = vmatpush1.msra.mxu0 0.0
    %134 = vmatprep.subr.mxu0 0.0
    %135 = vmatpush1.msra.mxu0 0.0
    %136 = vmatprep.subr.mxu0 0.0
    %137 = vmatpush1.msra.mxu0 0.0
    %138 = vmatprep.subr.mxu0 0.0
    %139 = vmatpush1.msra.mxu0 0.0
    %140 = vmatprep.subr.mxu0 0.0
    %141 = vmatpush1.msra.mxu0 0.0
    %142 = vmatprep.subr.mxu0 0.0
    %143 = vmatpush1.msra.mxu0 0.0
    %144 = vmatprep.subr.mxu0 0.0
    %145 = vmatpush1.msra.mxu0 0.0
    %146 = vmatprep.subr.mxu0 0.0
    %147 = vmatpush1.msra.mxu0 0.0
    %148 = vmatprep.subr.mxu0 0.0
    %149 = vmatpush1.msra.mxu0 0.0
    %150 = vmatprep.subr.mxu0 0.0
    %151 = vmatpush1.msra.mxu0 0.0
    %152 = vmatprep.subr.mxu0 0.0
    %153 = vmatpush1.msra.mxu0 0.0
    %154 = vmatprep.subr.mxu0 0.0
    %155 = vmatpush1.msra.mxu0 0.0
    %156 = vmatprep.subr.mxu0 0.0
    %157 = vmatpush1.msra.mxu0 0.0
    %158 = vmatprep.subr.mxu0 0.0
    %159 = vmatpush1.msra.mxu0 0.0
    %160 = vmatprep.subr.mxu0 0.0
    %161 = vmatpush1.msra.mxu0 0.0
    %162 = vmatprep.subr.mxu0 0.0
    %163 = vmatpush1.msra.mxu0 0.0
    %164 = vmatprep.subr.mxu0 0.0
    %165 = vmatpush1.msra.mxu0 0.0
    %166 = vmatprep.subr.mxu0 0.0
    %167 = vmatpush1.msra.mxu0 0.0
    %168 = vmatprep.subr.mxu0 0.0
    %169 = vmatpush1.msra.mxu0 0.0
    %170 = vmatprep.subr.mxu0 0.0
    %171 = vmatpush1.msra.mxu0 0.0
    %172 = vmatprep.subr.mxu0 0.0
    %173 = vmatpush1.msra.mxu0 0.0
    %174 = vmatprep.subr.mxu0 0.0
    %175 = vmatpush1.msra.mxu0 0.0
    %176 = vmatprep.subr.mxu0 0.0
    %177 = vmatpush1.msra.mxu0 0.0
    %178 = vmatprep.subr.mxu0 0.0
    %179 = vmatpush1.msra.mxu0 0.0
    %180 = vmatprep.subr.mxu0 0.0
    %181 = vmatpush1.msra.mxu0 0.0
    %182 = vmatprep.subr.mxu0 0.0
    %183 = vmatpush1.msra.mxu0 0.0
    %184 = vmatprep.subr.mxu0 0.0
    %185 = vmatpush1.msra.mxu0 0.0
    %186 = vmatprep.subr.mxu0 0.0
    %187 = vmatpush1.msra.mxu0 0.0
    %188 = vmatprep.subr.mxu0 0.0
    %189 = vmatpush1.msra.mxu0 0.0
    %190 = vmatprep.mubr.f32.mxu0 0.0
    %191 = vmatmul.mubr.f32.gmra.mrb[0].mxu0 %v124
    %v192 = vpop.f32.mrb[0].mxu0
    %v193 = vadd.f32 %v120, %v192
    %v194 = vpop.f32.mrb[0].mxu0
    %195 = vdwg.mxu0
    %196 = vst.msk [vmem:[#allocation2] sm:$0xff] %vm33, %v193
    // Predicated region
    $region22: #{neural_network_forward.1} parent=1 // pred_check
      _
    $region23: #{neural_network_forward.1} parent=1 // pred_check_branch
      %198 = sbr.rel (0) target = $region25
    $region24: #{neural_network_forward.1} parent=1 // pred_region
      %s200 = ssub.s32 128, 128
      %201 = vsyncadd [#allocation3], %s200
      %s203 = sshll.u32 [#allocation2], 4
      %s204 = int_to_ptr.vmem [resolvable:$true] %s203
      %206 = dma.vmem_to_hbm [thread:$0]  %s204, 128, %s5, [#allocation3]
    $region25: #{neural_network_forward.1} parent=1 // pred_fallthru
      _
    // Predicated region
    $region26: #{neural_network_forward.1} parent=1 // pred_check
      _
    $region27: #{neural_network_forward.1} parent=1 // pred_check_branch
      %208 = sbr.rel (0) target = $region29
    $region28: #{neural_network_forward.1} parent=1 // pred_region
      %209 = dma.done [#allocation3], 128
    $region29: #{neural_network_forward.1} parent=1 // pred_fallthru
      _
    %210 = vsyncpa [#allocation3], 1

</llo_original>
